<compile_context>
chip_gen: v5e
topology: v5e:2x2
jax: 0.10.0
libtpu: 0.0.40
codegen_flags: <defaults>
</compile_context>

<pallas_src>
import functools

import jax
import jax.numpy as jnp
from jax.experimental import pallas as pl
from jax.experimental.pallas import tpu as pltpu

_MASK_VALUE = -1e30  # finite mask value keeps exp()/max() NaN-free


# ---------------------------------------------------------------------------
# Helpers
# ---------------------------------------------------------------------------
def _pick_tile(dim, preferred, align):
    """Largest aligned tile that divides `dim`; full dim if none found."""
    if dim <= preferred:
        return dim
    t = (preferred // align) * align
    while t >= align:
        if dim % t == 0:
            return t
        t -= align
    return dim


def _vmem_limit_bytes():
    # v7x has 64 MiB VMEM per TensorCore, v5e/v6e have 128 MiB.  Leave
    # headroom for double-buffers / compiler scratch on the small part and
    # allow bigger blocks on the 128 MiB parts.
    try:
        cap = pltpu.get_tpu_info().vmem_capacity_bytes
        return int(min(cap * 5 // 8, 96 * 1024 * 1024))
    except Exception:
        return 40 * 1024 * 1024


# ---------------------------------------------------------------------------
# Kernel 1: tiled linear  y = x @ w_t   (w_t pre-transposed to [in, out])
# ---------------------------------------------------------------------------
def _matmul_kernel(x_ref, w_ref, o_ref):
    # K-resident fast path: no accumulator round-trip.
    o_ref[...] = jnp.dot(x_ref[...], w_ref[...],
                         preferred_element_type=jnp.float32).astype(o_ref.dtype)


def _matmul_acc_kernel(x_ref, w_ref, o_ref, acc_ref):
    @pl.when(pl.program_id(2) == 0)
    def _():
        acc_ref[...] = jnp.zeros_like(acc_ref)

    acc_ref[...] += jnp.dot(x_ref[...], w_ref[...],
                            preferred_element_type=jnp.float32)

    @pl.when(pl.program_id(2) == pl.num_programs(2) - 1)
    def _():
        o_ref[...] = acc_ref[...].astype(o_ref.dtype)


def linear(x, w_t, *, tm=256, tn=512, tk=2048):
    M, K = x.shape
    K2, N = w_t.shape
    assert K == K2
    tm = _pick_tile(M, tm, 8)
    tn = _pick_tile(N, tn, 128)
    tk = _pick_tile(K, tk, 128)
    itemsize = jnp.dtype(x.dtype).itemsize
    ce = pl.CostEstimate(flops=2 * M * N * K, transcendentals=0,
                         bytes_accessed=(M * K + K * N + M * N) * itemsize)

    if tk == K:
        # Whole (K, tn) weight panel resident: drop the K grid axis entirely.
        return pl.pallas_call(
            _matmul_kernel,
            out_shape=jax.ShapeDtypeStruct((M, N), x.dtype),
            grid_spec=pltpu.PrefetchScalarGridSpec(
                num_scalar_prefetch=0,
                grid=(M // tm, N // tn),
                in_specs=[
                    pl.BlockSpec((tm, K), lambda i, j: (i, 0)),
                    pl.BlockSpec((K, tn), lambda i, j: (0, j)),
                ],
                out_specs=pl.BlockSpec((tm, tn), lambda i, j: (i, j)),
            ),
            compiler_params=pltpu.CompilerParams(
                dimension_semantics=("parallel", "parallel"),
                vmem_limit_bytes=_vmem_limit_bytes()),
            cost_estimate=ce,
        )(x, w_t)

    # K-streaming path with fp32 VMEM accumulator.
    return pl.pallas_call(
        _matmul_acc_kernel,
        out_shape=jax.ShapeDtypeStruct((M, N), x.dtype),
        grid_spec=pltpu.PrefetchScalarGridSpec(
            num_scalar_prefetch=0,
            grid=(M // tm, N // tn, K // tk),
            in_specs=[
                pl.BlockSpec((tm, tk), lambda i, j, k: (i, k)),
                pl.BlockSpec((tk, tn), lambda i, j, k: (k, j)),
            ],
            out_specs=pl.BlockSpec((tm, tn), lambda i, j, k: (i, j)),
            scratch_shapes=[pltpu.VMEM((tm, tn), jnp.float32)],
        ),
        compiler_params=pltpu.CompilerParams(
            dimension_semantics=("parallel", "parallel", "arbitrary"),
            vmem_limit_bytes=_vmem_limit_bytes()),
        cost_estimate=ce,
    )(x, w_t)


# ---------------------------------------------------------------------------
# Kernel 2: RMSNorm (FastRMSNorm semantics)
# ---------------------------------------------------------------------------
def _rmsnorm_kernel(x_ref, w_ref, o_ref, *, eps):
    x = x_ref[...].astype(jnp.float32)
    var = jnp.mean(x * x, axis=-1, keepdims=True)
    normed = x * jax.lax.rsqrt(var + eps)
    o_ref[...] = (normed.astype(o_ref.dtype) * w_ref[...]).astype(o_ref.dtype)


def rms_norm(x, w, *, eps, tm=256):
    T, D = x.shape
    tm = _pick_tile(T, tm, 8)
    w2d = w.reshape(1, D)
    return pl.pallas_call(
        functools.partial(_rmsnorm_kernel, eps=eps),
        out_shape=jax.ShapeDtypeStruct((T, D), x.dtype),
        grid_spec=pltpu.PrefetchScalarGridSpec(
            num_scalar_prefetch=0,
            grid=(T // tm,),
            in_specs=[
                pl.BlockSpec((tm, D), lambda i: (i, 0)),
                pl.BlockSpec((1, D), lambda i: (0, 0)),
            ],
            out_specs=pl.BlockSpec((tm, D), lambda i: (i, 0)),
        ),
        compiler_params=pltpu.CompilerParams(
            dimension_semantics=("parallel",),
            vmem_limit_bytes=_vmem_limit_bytes()),
    )(x, w2d)


# ---------------------------------------------------------------------------
# Kernel 3: causal flash attention over MLA heads (prefill, one sequence)
#   q, k: [H, T, Dk] (q pre-scaled by softmax_scale);  v: [H, T, Dv]
#   grid = (head tiles, q tiles, kv tiles)
# ---------------------------------------------------------------------------
def _mla_attn_kernel(q_ref, k_ref, v_ref, o_ref, m_sc, l_sc, acc_sc, *, tq, tkv):
    qi = pl.program_id(1)
    ki = pl.program_id(2)

    @pl.when(ki == 0)
    def _():
        m_sc[...] = jnp.full_like(m_sc, -jnp.inf)
        l_sc[...] = jnp.zeros_like(l_sc)
        acc_sc[...] = jnp.zeros_like(acc_sc)

    q_start = qi * tq
    k_start = ki * tkv
    contributes = k_start <= q_start + (tq - 1)   # not strictly above diagonal
    needs_mask = k_start + (tkv - 1) > q_start    # block straddles the diagonal

    def _block(masked):
        s = jnp.einsum('hqd,hkd->hqk', q_ref[...], k_ref[...],
                       preferred_element_type=jnp.float32)
        if masked:
            q_pos = q_start + jax.lax.broadcasted_iota(jnp.int32, s.shape, 1)
            k_pos = k_start + jax.lax.broadcasted_iota(jnp.int32, s.shape, 2)
            s = jnp.where(q_pos >= k_pos, s, _MASK_VALUE)
        m_prev = m_sc[...]
        m_new = jnp.maximum(m_prev, s.max(axis=-1, keepdims=True))
        alpha = jnp.exp(m_prev - m_new)
        p = jnp.exp(s - m_new)
        l_sc[...] = alpha * l_sc[...] + p.sum(axis=-1, keepdims=True)
        acc_sc[...] = alpha * acc_sc[...] + jnp.einsum(
            'hqk,hkd->hqd', p.astype(v_ref.dtype), v_ref[...],
            preferred_element_type=jnp.float32)
        m_sc[...] = m_new

    # Diagonal blocks: masked path.
    @pl.when(jnp.logical_and(contributes, needs_mask))
    def _():
        _block(masked=True)

    # Fully-below-diagonal blocks: mask-free path (no iota/compare/select).
    @pl.when(jnp.logical_not(needs_mask))
    def _():
        _block(masked=False)

    @pl.when(ki == pl.num_programs(2) - 1)
    def _():
        o_ref[...] = (acc_sc[...] *
                      pl.reciprocal(l_sc[...], approx=True)).astype(o_ref.dtype)


def mla_prefill_attention(q, k, v, *, tq=256, tkv=256, th=8):
    """q, k: [H, T, Dk] (q already scaled); v: [H, T, Dv] -> [H, T, Dv]."""
    H, T, Dk = q.shape
    Dv = v.shape[-1]
    tq = _pick_tile(T, tq, 8)
    tkv = _pick_tile(T, tkv, 8)
    th = min(th, H)
    while H % th:
        th -= 1
    nq, nkv = T // tq, T // tkv
    itemsize = jnp.dtype(q.dtype).itemsize

    def q_map(h, qi, ki):
        return (h, qi, 0)

    def kv_map(h, qi, ki):
        # Clamp to the last kv block this q tile can see: above-diagonal grid
        # steps keep the same block index -> no extra DMA.
        last = (qi * tq + tq - 1) // tkv
        return (h, jnp.minimum(ki, last), 0)

    kernel = functools.partial(_mla_attn_kernel, tq=tq, tkv=tkv)
    # Causal: ~half the score/PV flops; K/V re-read ~(nq+1)/2 times on average.
    flops = H * T * T * (Dk + Dv)
    kv_bytes = H * T * (Dk + Dv) * itemsize * max(1, (nq + 1) // 2)
    return pl.pallas_call(
        kernel,
        out_shape=jax.ShapeDtypeStruct((H, T, Dv), q.dtype),
        grid_spec=pltpu.PrefetchScalarGridSpec(
            num_scalar_prefetch=0,
            grid=(H // th, nq, nkv),
            in_specs=[
                pl.BlockSpec((th, tq, Dk), q_map),
                pl.BlockSpec((th, tkv, Dk), kv_map),
                pl.BlockSpec((th, tkv, Dv), kv_map),
            ],
            out_specs=pl.BlockSpec((th, tq, Dv), q_map),
            scratch_shapes=[
                pltpu.VMEM((th, tq, 1), jnp.float32),
                pltpu.VMEM((th, tq, 1), jnp.float32),
                pltpu.VMEM((th, tq, Dv), jnp.float32),
            ],
        ),
        compiler_params=pltpu.CompilerParams(
            dimension_semantics=("parallel", "parallel", "arbitrary"),
            vmem_limit_bytes=_vmem_limit_bytes()),
        cost_estimate=pl.CostEstimate(
            flops=flops,
            transcendentals=H * T * T // 2,
            bytes_accessed=H * T * (Dk + Dv) * itemsize + kv_bytes),
    )(q, k, v)


# ---------------------------------------------------------------------------
# RoPE glue (matches the module's interleave->neox permutation + rotation)
# ---------------------------------------------------------------------------
def _deinterleave(x):
    # view(..., d//2, 2).transpose(-2, -1).reshape(..., d): evens then odds.
    d = x.shape[-1]
    x = x.reshape(x.shape[:-1] + (d // 2, 2))
    return jnp.concatenate([x[..., 0], x[..., 1]], axis=-1)


def _apply_rope(x, cos, sin):
    # x: [T, h, d] in neox (half/half) layout; cos/sin: [T, d//2]
    d = x.shape[-1]
    x1, x2 = x[..., :d // 2], x[..., d // 2:]
    c = cos[:, None, :].astype(x.dtype)
    s = sin[:, None, :].astype(x.dtype)
    return jnp.concatenate([x1 * c - x2 * s, x2 * c + x1 * s], axis=-1)


# ---------------------------------------------------------------------------
# Full prefill forward (Pallas-backed)
# ---------------------------------------------------------------------------
def deepseek_v3_attention_prefill(hidden_states, cos, sin, params, cfg, *,
                                  attn_tq=256, attn_tkv=256, attn_th=8):
    T, _ = hidden_states.shape
    dt = hidden_states.dtype
    nH = cfg['num_heads']
    nope = cfg['qk_nope_head_dim']
    rope = cfg['qk_rope_head_dim']
    head_size = nope + rope
    v_dim = cfg['v_head_dim']
    kv_lora = cfg['kv_lora_rank']
    eps = cfg['rms_norm_eps']
    scale = cfg['softmax_scale']

    # --- q path (q_lora_rank branch: q_a_proj -> RMSNorm -> q_b_proj) ---
    if params.get('wq_a_t') is None:
        q_c = hidden_states
    else:
        q_c = rms_norm(linear(hidden_states, params['wq_a_t']),
                       params['q_a_ln_w'], eps=eps)
    query = linear(q_c, params['wq_b_t']).reshape(T, nH, head_size)
    q_nope = query[..., :nope]
    q_pe = query[..., nope:]

    # --- compressed kv path ---
    ckv = linear(hidden_states, params['wkv_a_t'])          # [T, kv_lora+rope]
    compressed_kv = ckv[:, :kv_lora]
    key_pe = ckv[:, kv_lora:].reshape(T, 1, rope)
    kv_c_normed = rms_norm(compressed_kv, params['kv_a_ln_w'], eps=eps)

    # --- rotary embedding ---
    q_pe = _apply_rope(_deinterleave(q_pe), cos, sin)
    key_pe = _apply_rope(_deinterleave(key_pe), cos, sin)

    # --- latent vector the module would store in the MLA KV cache ---
    latent_vec_k = jnp.concatenate(
        [kv_c_normed, key_pe.reshape(T, rope)], axis=-1)
    # TODO(synk): paged kv_cache.store (scatter into `slots`) not implemented.

    # --- decompress kv, assemble per-head q/k/v (V stays at v_dim, unpadded) ---
    kv = linear(kv_c_normed, params['wkv_b_t']).reshape(T, nH, nope + v_dim)
    k_nope = kv[..., :nope]
    value = kv[..., nope:]                                  # [T, nH, v_dim]

    # Fold softmax scale into Q once (fuses with concat/transpose in XLA).
    q_full = (jnp.concatenate([q_nope, q_pe], axis=-1) * scale).astype(dt)
    k_full = jnp.concatenate(
        [k_nope, jnp.broadcast_to(key_pe, (T, nH, rope))], axis=-1)

    # Head-major layout for the attention kernel.
    # TODO(synk): fuse this transpose into the q_b/kv_b projection epilogues.
    q_hm = jnp.transpose(q_full, (1, 0, 2))                 # [nH, T, Dk]
    k_hm = jnp.transpose(k_full, (1, 0, 2))
    v_hm = jnp.transpose(value, (1, 0, 2))                  # [nH, T, v_dim]

    attn = mla_prefill_attention(q_hm, k_hm, v_hm,
                                 tq=attn_tq, tkv=attn_tkv, th=attn_th)
    attn = jnp.transpose(attn, (1, 0, 2)).reshape(T, nH * v_dim)

    # --- output projection (TP row-linear; all-reduce no-op for 1 shard) ---
    # TODO(synk): cross-device all-reduce for TP>1 not implemented.
    out = linear(attn, params['wo_t'])
    return out, latent_vec_k


# ---------------------------------------------------------------------------
# Pure-JAX reference of the same forward (for validation)
# ---------------------------------------------------------------------------
def _reference(hidden_states, cos, sin, params, cfg):
    T, _ = hidden_states.shape
    dt = hidden_states.dtype
    nH = cfg['num_heads']
    nope = cfg['qk_nope_head_dim']
    rope = cfg['qk_rope_head_dim']
    head_size = nope + rope
    v_dim = cfg['v_head_dim']
    kv_lora = cfg['kv_lora_rank']
    eps = cfg['rms_norm_eps']
    scale = cfg['softmax_scale']

    def lin(x, w_t):
        return jnp.dot(x, w_t, preferred_element_type=jnp.float32).astype(dt)

    def rn(x, w):
        xf = x.astype(jnp.float32)
        var = jnp.mean(xf * xf, axis=-1, keepdims=True)
        return (xf * jax.lax.rsqrt(var + eps)).astype(dt) * w

    q_c = hidden_states if params.get('wq_a_t') is None else rn(
        lin(hidden_states, params['wq_a_t']), params['q_a_ln_w'])
    query = lin(q_c, params['wq_b_t']).reshape(T, nH, head_size)
    q_nope, q_pe = query[..., :nope], query[..., nope:]

    ckv = lin(hidden_states, params['wkv_a_t'])
    compressed_kv, key_pe = ckv[:, :kv_lora], ckv[:, kv_lora:].reshape(T, 1, rope)
    kv_c_normed = rn(compressed_kv, params['kv_a_ln_w'])

    q_pe = _apply_rope(_deinterleave(q_pe), cos, sin)
    key_pe = _apply_rope(_deinterleave(key_pe), cos, sin)
    latent_vec_k = jnp.concatenate(
        [kv_c_normed, key_pe.reshape(T, rope)], axis=-1)

    kv = lin(kv_c_normed, params['wkv_b_t']).reshape(T, nH, nope + v_dim)
    k_nope, value = kv[..., :nope], kv[..., nope:]

    q_full = (jnp.concatenate([q_nope, q_pe], axis=-1) * scale).astype(dt)
    k_full = jnp.concatenate(
        [k_nope, jnp.broadcast_to(key_pe, (T, nH, rope))], axis=-1)

    s = jnp.einsum('qhd,khd->hqk', q_full, k_full,
                   preferred_element_type=jnp.float32)
    mask = jnp.tril(jnp.ones((T, T), dtype=bool))
    s = jnp.where(mask[None], s, -jnp.inf)
    p = jax.nn.softmax(s, axis=-1).astype(dt)
    attn = jnp.einsum('hqk,khd->qhd', p, value,
                      preferred_element_type=jnp.float32).astype(dt)
    out = lin(attn.reshape(T, nH * v_dim), params['wo_t'])
    return out, latent_vec_k


# ---------------------------------------------------------------------------
if __name__ == "__main__":
    # Small DeepseekV3-like config (single TP shard, one prefill sequence).
    T, HID = 256, 256
    cfg = dict(
        num_heads=4,
        qk_nope_head_dim=64,
        qk_rope_head_dim=32,
        v_head_dim=64,
        kv_lora_rank=128,
        q_lora_rank=128,
        rms_norm_eps=1e-6,
    )
    head_size = cfg['qk_nope_head_dim'] + cfg['qk_rope_head_dim']       # 96
    cfg['softmax_scale'] = head_size ** -0.5        # mscale == 1 (no yarn)
    nH, nope, rope = cfg['num_heads'], cfg['qk_nope_head_dim'], cfg['qk_rope_head_dim']
    v_dim, kv_lora, q_lora = cfg['v_head_dim'], cfg['kv_lora_rank'], cfg['q_lora_rank']

    # bf16 activations/weights with fp32 MXU accumulation (native high-rate
    # MXU path on v5e/v6e/v7x, half the HBM bytes of f32).
    dtype = jnp.bfloat16
    keys = jax.random.split(jax.random.PRNGKey(0), 9)
    x = jax.random.normal(keys[0], (T, HID), jnp.float32).astype(dtype)
    wq_a = (jax.random.normal(keys[1], (q_lora, HID), jnp.float32) * 0.05).astype(dtype)
    q_a_ln_w = (1.0 + 0.1 * jax.random.normal(keys[2], (q_lora,), jnp.float32)).astype(dtype)
    wq_b = (jax.random.normal(keys[3], (nH * head_size, q_lora), jnp.float32) * 0.05).astype(dtype)
    wkv_a = (jax.random.normal(keys[4], (kv_lora + rope, HID), jnp.float32) * 0.05).astype(dtype)
    kv_a_ln_w = (1.0 + 0.1 * jax.random.normal(keys[5], (kv_lora,), jnp.float32)).astype(dtype)
    wkv_b = (jax.random.normal(keys[6], (nH * (nope + v_dim), kv_lora), jnp.float32) * 0.05).astype(dtype)
    wo = (jax.random.normal(keys[7], (HID, nH * v_dim), jnp.float32) * 0.05).astype(dtype)

    # One-time weight transposition at init (NOT per forward call).
    params = dict(
        wq_a_t=wq_a.T, q_a_ln_w=q_a_ln_w,
        wq_b_t=wq_b.T,
        wkv_a_t=wkv_a.T, kv_a_ln_w=kv_a_ln_w,
        wkv_b_t=wkv_b.T,
        wo_t=wo.T,
    )

    # Rotary tables: cos/sin of shape [T, rope//2].
    pos = jnp.arange(T, dtype=jnp.float32)
    inv_freq = 1.0 / (10000.0 ** (jnp.arange(0, rope, 2, dtype=jnp.float32) / rope))
    ang = pos[:, None] * inv_freq[None, :]
    cos, sin = jnp.cos(ang).astype(dtype), jnp.sin(ang).astype(dtype)

    # Small attention tiles so the grid (head x q x kv) and the causal
    # diagonal / below-diagonal / skipped paths are all exercised.
    out, latent = deepseek_v3_attention_prefill(
        x, cos, sin, params, cfg, attn_tq=128, attn_tkv=128, attn_th=8)
    out = jax.block_until_ready(out)
    latent = jax.block_until_ready(latent)

    ref_out, ref_latent = _reference(x, cos, sin, params, cfg)

    assert out.shape == (T, HID)
    assert latent.shape == (T, kv_lora + rope)
    assert jnp.allclose(out.astype(jnp.float32), ref_out.astype(jnp.float32),
                        atol=2e-2, rtol=2e-2), "attn output mismatch"
    assert jnp.allclose(latent.astype(jnp.float32),
                        ref_latent.astype(jnp.float32),
                        atol=2e-2, rtol=2e-2), "latent mismatch"

    # Also exercise the K-streaming accumulator path of `linear`.
    y_stream = linear(x, params['wq_a_t'], tk=128)
    y_ref = jnp.dot(x, params['wq_a_t'],
                    preferred_element_type=jnp.float32).astype(dtype)
    y_stream = jax.block_until_ready(y_stream)
    assert jnp.allclose(y_stream.astype(jnp.float32), y_ref.astype(jnp.float32),
                        atol=2e-2, rtol=2e-2), "streaming linear mismatch"

    print("KERNEL_OK")
</pallas_src>

<mosaic_0001>
module attributes {stable_mosaic.version = 11 : i64} {
  func.func @_matmul_kernel(%arg0: i32, %arg1: i32, %arg2: memref<256x256xbf16, #tpu.memory_space<vmem>>, %arg3: memref<256x128xbf16, #tpu.memory_space<vmem>>, %arg4: memref<256x128xbf16, #tpu.memory_space<vmem>>) attributes {dimension_semantics = [#tpu.dimension_semantics<parallel>, #tpu.dimension_semantics<parallel>], iteration_bounds = array<i64: 1, 1>, scalar_prefetch = 0 : i64, scratch_operands = 0 : i64, tpu.core_type = #tpu.core_type<tc>, window_params = [{transform_indices = @transform_0, window_bounds = array<i64: 256, 256>}, {transform_indices = @transform_1, window_bounds = array<i64: 256, 128>}, {transform_indices = @transform_2, window_bounds = array<i64: 256, 128>}]} {
    %c0 = arith.constant 0 : index
    %c0_0 = arith.constant 0 : index
    %0 = vector.load %arg2[%c0, %c0_0] : memref<256x256xbf16, #tpu.memory_space<vmem>>, vector<256x256xbf16>
    %c0_1 = arith.constant 0 : index
    %c0_2 = arith.constant 0 : index
    %1 = vector.load %arg3[%c0_1, %c0_2] : memref<256x128xbf16, #tpu.memory_space<vmem>>, vector<256x128xbf16>
    %cst = arith.constant dense<0.000000e+00> : vector<256x128xf32>
    %2 = tpu.matmul %0, %1, %cst {dimension_numbers = #tpu.dot_dimension_numbers<[1], [0], [0], [1], [0, 0, 1, 1], [], []>} : vector<256x256xbf16>, vector<256x128xbf16>, vector<256x128xf32> -> vector<256x128xf32>
    %3 = arith.truncf %2 : vector<256x128xf32> to vector<256x128xbf16>
    %c0_3 = arith.constant 0 : index
    %c0_4 = arith.constant 0 : index
    %4 = vector.load %arg4[%c0_3, %c0_4] : memref<256x128xbf16, #tpu.memory_space<vmem>>, vector<256x128xbf16>
    tpu.vector_store %arg4[%c0_3, %c0_4], %3 {strides = array<i32>} : memref<256x128xbf16, #tpu.memory_space<vmem>>, vector<256x128xbf16>,
    return
  }
  func.func @transform_0(%arg0: i32, %arg1: i32) -> (i32, i32) {
    %c0_i32 = arith.constant 0 : i32
    %c0_i32_0 = arith.constant 0 : i32
    return %arg0, %c0_i32 : i32, i32
  }
  func.func @transform_1(%arg0: i32, %arg1: i32) -> (i32, i32) {
    %c0_i32 = arith.constant 0 : i32
    %c0_i32_0 = arith.constant 0 : i32
    return %c0_i32, %arg1 : i32, i32
  }
  func.func @transform_2(%arg0: i32, %arg1: i32) -> (i32, i32) {
    %c0_i32 = arith.constant 0 : i32
    return %arg0, %arg1 : i32, i32
  }
}

</mosaic_0001>

<llo_original>
// kernel: tpu_custom_call.1
$region0: #{tpu_custom_call.1}
  #allocation0 [shape = 'u32[]', space=smem, size = 0x4, offset = 0x4, fixed_abs, tag = 'smem constant byte address 0x4 - core index']
  #allocation1 [shape = 'u32[72,128]{1,0:T(1,128)}', space=vmem, size = 0x9000, scoped, tag = 'internal scratch']
  %s0 = inlined_call_operand.hbm [shape: bf16[256,256], index: 0, kind: input, shape index: {}]
  %s1 = inlined_call_operand.hbm [shape: bf16[256,128], index: 1, kind: input, shape index: {}]
  %s2 = inlined_call_operand.hbm [shape: bf16[256,128], index: 2, kind: output, shape index: {}]
  %s3 = sld [smem:[#allocation0]]
  $region26: #{tpu_custom_call.1} parent=0
    _
  %s5 = ssub.s32 1, %s3
  %s6 = scalar_select 0, %s5, %s3
  $region1: #{tpu_custom_call.1} parent=0
    #allocation2 [shape = 'u8[131072]{0}', space=vmem, size = 0x20000, scoped, tag = 'input window, operand 0, single buffered']
    #allocation3 [shape = 's32[1]{0}', space=sflag, size = 0x4, scoped, tag = 'scoped memory for tpu_custom_call.1']
    #allocation4 [shape = 's32[1]{0}', space=sflag, size = 0x4, scoped, tag = 'scoped memory for tpu_custom_call.1']
    #allocation5 [shape = 'u8[65536]{0}', space=vmem, size = 0x10000, scoped, tag = 'input window, operand 1, single buffered']
    #allocation6 [shape = 's32[1]{0}', space=sflag, size = 0x4, scoped, tag = 'scoped memory for tpu_custom_call.1']
    #allocation7 [shape = 'u8[65536]{0}', space=vmem, size = 0x10000, scoped, tag = 'output window, operand 0, single buffered']
    %7 = vsyncpa [#allocation3], 0
    %8 = vsyncpa [#allocation6], 0
    %9 = vsyncpa [#allocation4], 0
    // Predicated region
    $region2: #{tpu_custom_call.1} parent=1 // pred_check
      _
    $region3: #{tpu_custom_call.1} parent=1 // pred_check_branch
      %11 = sbr.rel (0) target = $region5
    $region4: #{tpu_custom_call.1} parent=1 // pred_region
      %13 = vsyncadd [#allocation3], 0
      %s14 = sshll.u32 %s0, 4
      %s15 = int_to_ptr.hbm [resolvable:$true] %s14
      %s16 = sshll.u32 [#allocation2], 4
      %s17 = int_to_ptr.vmem [resolvable:$true] %s16
      %22 = dma.hbm_to_vmem [thread:$0]  %s15, 4096, %s17, [#allocation3], 128, 128, 8
    $region5: #{tpu_custom_call.1} parent=1 // pred_fallthru
      _
    // Predicated region
    $region6: #{tpu_custom_call.1} parent=1 // pred_check
      _
    $region7: #{tpu_custom_call.1} parent=1 // pred_check_branch
      %24 = sbr.rel (0) target = $region9
    $region8: #{tpu_custom_call.1} parent=1 // pred_region
      %26 = vsyncadd [#allocation6], 0
      %s27 = sshll.u32 %s1, 4
      %s28 = int_to_ptr.hbm [resolvable:$true] %s27
      %s29 = sshll.u32 [#allocation5], 4
      %s30 = int_to_ptr.vmem [resolvable:$true] %s29
      %35 = dma.hbm_to_vmem [thread:$0]  %s28, 2048, %s30, [#allocation6], 64, 64, 4
    $region9: #{tpu_custom_call.1} parent=1 // pred_fallthru
      _
    // Predicated region
    $region10: #{tpu_custom_call.1} parent=1 // pred_check
      _
    $region11: #{tpu_custom_call.1} parent=1 // pred_check_branch
      %37 = sbr.rel (0) target = $region13
    $region12: #{tpu_custom_call.1} parent=1 // pred_region
      %39 = dma.done [#allocation3], 4096
    $region13: #{tpu_custom_call.1} parent=1 // pred_fallthru
      _
    // Predicated region
    $region14: #{tpu_custom_call.1} parent=1 // pred_check
      _
    $region15: #{tpu_custom_call.1} parent=1 // pred_check_branch
      %41 = sbr.rel (0) target = $region17
    $region16: #{tpu_custom_call.1} parent=1 // pred_region
      %43 = dma.done [#allocation6], 2048
    $region17: #{tpu_custom_call.1} parent=1 // pred_fallthru
      _
    %v44 = vld [vmem:[#allocation2] sm:$0xff]
    %v45 = vld [vmem:[#allocation2 + $0x8] sm:$0xff]
    %v46 = vld [vmem:[#allocation2 + $0x10] sm:$0xff]
    %v47 = vld [vmem:[#allocation2 + $0x18] sm:$0xff]
    %v48 = vld [vmem:[#allocation2 + $0x20] sm:$0xff]
    %v49 = vld [vmem:[#allocation2 + $0x28] sm:$0xff]
    %v50 = vld [vmem:[#allocation2 + $0x30] sm:$0xff]
    %v51 = vld [vmem:[#allocation2 + $0x38] sm:$0xff]
    %v52 = vld [vmem:[#allocation2 + $0x40] sm:$0xff]
    %v53 = vld [vmem:[#allocation2 + $0x48] sm:$0xff]
    %v54 = vld [vmem:[#allocation2 + $0x50] sm:$0xff]
    %v55 = vld [vmem:[#allocation2 + $0x58] sm:$0xff]
    %v56 = vld [vmem:[#allocation2 + $0x60] sm:$0xff]
    %v57 = vld [vmem:[#allocation2 + $0x68] sm:$0xff]
    %v58 = vld [vmem:[#allocation2 + $0x70] sm:$0xff]
    %v59 = vld [vmem:[#allocation2 + $0x78] sm:$0xff]
    %v60 = vld [vmem:[#allocation2 + $0x80] sm:$0xff]
    %v61 = vld [vmem:[#allocation2 + $0x88] sm:$0xff]
    %v62 = vld [vmem:[#allocation2 + $0x90] sm:$0xff]
    %v63 = vld [vmem:[#allocation2 + $0x98] sm:$0xff]
    %v64 = vld [vmem:[#allocation2 + $0xa0] sm:$0xff]
    %v65 = vld [vmem:[#allocation2 + $0xa8] sm:$0xff]
    %v66 = vld [vmem:[#allocation2 + $0xb0] sm:$0xff]
    %v67 = vld [vmem:[#allocation2 + $0xb8] sm:$0xff]
    %v68 = vld [vmem:[#allocation2 + $0xc0] sm:$0xff]
    %v69 = vld [vmem:[#allocation2 + $0xc8] sm:$0xff]
    %v70 = vld [vmem:[#allocation2 + $0xd0] sm:$0xff]
    %v71 = vld [vmem:[#allocation2 + $0xd8] sm:$0xff]
    %v72 = vld [vmem:[#allocation2 + $0xe0] sm:$0xff]
    %v73 = vld [vmem:[#allocation2 + $0xe8] sm:$0xff]
    %v74 = vld [vmem:[#allocation2 + $0xf0] sm:$0xff]
    %v75 = vld [vmem:[#allocation2 + $0xf8] sm:$0xff]
    %v76 = vld [vmem:[#allocation5] sm:$0xf]
    %v77 = vld [vmem:[#allocation5 + $0x4] sm:$0xf]
    %v78 = vld [vmem:[#allocation5 + $0x8] sm:$0xf]
    %v79 = vld [vmem:[#allocation5 + $0xc] sm:$0xf]
    %v80 = vld [vmem:[#allocation5 + $0x10] sm:$0xf]
    %v81 = vld [vmem:[#allocation5 + $0x14] sm:$0xf]
    %v82 = vld [vmem:[#allocation5 + $0x18] sm:$0xf]
    %v83 = vld [vmem:[#allocation5 + $0x1c] sm:$0xf]
    %v84 = vld [vmem:[#allocation5 + $0x20] sm:$0xf]
    %v85 = vld [vmem:[#allocation5 + $0x24] sm:$0xf]
    %v86 = vld [vmem:[#allocation5 + $0x28] sm:$0xf]
    %v87 = vld [vmem:[#allocation5 + $0x2c] sm:$0xf]
    %v88 = vld [vmem:[#allocation5 + $0x30] sm:$0xf]
    %v89 = vld [vmem:[#allocation5 + $0x34] sm:$0xf]
    %v90 = vld [vmem:[#allocation5 + $0x38] sm:$0xf]
    %v91 = vld [vmem:[#allocation5 + $0x3c] sm:$0xf]
    %v92 = vld [vmem:[#allocation5 + $0x40] sm:$0xf]
    %v93 = vld [vmem:[#allocation5 + $0x44] sm:$0xf]
    %v94 = vld [vmem:[#allocation5 + $0x48] sm:$0xf]
    %v95 = vld [vmem:[#allocation5 + $0x4c] sm:$0xf]
    %v96 = vld [vmem:[#allocation5 + $0x50] sm:$0xf]
    %v97 = vld [vmem:[#allocation5 + $0x54] sm:$0xf]
    %v98 = vld [vmem:[#allocation5 + $0x58] sm:$0xf]
    %v99 = vld [vmem:[#allocation5 + $0x5c] sm:$0xf]
    %v100 = vld [vmem:[#allocation5 + $0x60] sm:$0xf]
    %v101 = vld [vmem:[#allocation5 + $0x64] sm:$0xf]
    %v102 = vld [vmem:[#allocation5 + $0x68] sm:$0xf]
    %v103 = vld [vmem:[#allocation5 + $0x6c] sm:$0xf]
    %v104 = vld [vmem:[#allocation5 + $0x70] sm:$0xf]
    %v105 = vld [vmem:[#allocation5 + $0x74] sm:$0xf]
    %v106 = vld [vmem:[#allocation5 + $0x78] sm:$0xf]
    %v107 = vld [vmem:[#allocation5 + $0x7c] sm:$0xf]
    %v140 = vunpack.c.l.b16 %v44
    %v141 = vunpack.c.h.b16 %v44
    %v142 = vunpack.c.l.b16 %v45
    %v143 = vunpack.c.h.b16 %v45
    %v144 = vunpack.c.l.b16 %v46
    %v145 = vunpack.c.h.b16 %v46
    %v146 = vunpack.c.l.b16 %v47
    %v147 = vunpack.c.h.b16 %v47
    %v148 = vunpack.c.l.b16 %v48
    %v149 = vunpack.c.h.b16 %v48
    %v150 = vunpack.c.l.b16 %v49
    %v151 = vunpack.c.h.b16 %v49
    %v152 = vunpack.c.l.b16 %v50
    %v153 = vunpack.c.h.b16 %v50
    %v154 = vunpack.c.l.b16 %v51
    %v155 = vunpack.c.h.b16 %v51
    %v156 = vunpack.c.l.b16 %v52
    %v157 = vunpack.c.h.b16 %v52
    %v158 = vunpack.c.l.b16 %v53
    %v159 = vunpack.c.h.b16 %v53
    %v160 = vunpack.c.l.b16 %v54
    %v161 = vunpack.c.h.b16 %v54
    %v162 = vunpack.c.l.b16 %v55
    %v163 = vunpack.c.h.b16 %v55
    %v164 = vunpack.c.l.b16 %v56
    %v165 = vunpack.c.h.b16 %v56
    %v166 = vunpack.c.l.b16 %v57
    %v167 = vunpack.c.h.b16 %v57
    %v168 = vunpack.c.l.b16 %v58
    %v169 = vunpack.c.h.b16 %v58
    %v170 = vunpack.c.l.b16 %v59
    %v171 = vunpack.c.h.b16 %v59
    %v172 = vunpack.c.l.b16 %v60
    %v173 = vunpack.c.h.b16 %v60
    %v174 = vunpack.c.l.b16 %v61
    %v175 = vunpack.c.h.b16 %v61
    %v176 = vunpack.c.l.b16 %v62
    %v177 = vunpack.c.h.b16 %v62
    %v178 = vunpack.c.l.b16 %v63
    %v179 = vunpack.c.h.b16 %v63
    %v180 = vunpack.c.l.b16 %v64
    %v181 = vunpack.c.h.b16 %v64
    %v182 = vunpack.c.l.b16 %v65
    %v183 = vunpack.c.h.b16 %v65
    %v184 = vunpack.c.l.b16 %v66
    %v185 = vunpack.c.h.b16 %v66
    %v186 = vunpack.c.l.b16 %v67
    %v187 = vunpack.c.h.b16 %v67
    %v188 = vunpack.c.l.b16 %v68
    %v189 = vunpack.c.h.b16 %v68
    %v190 = vunpack.c.l.b16 %v69
    %v191 = vunpack.c.h.b16 %v69
    %v192 = vunpack.c.l.b16 %v70
    %v193 = vunpack.c.h.b16 %v70
    %v194 = vunpack.c.l.b16 %v71
    %v195 = vunpack.c.h.b16 %v71
    %v196 = vunpack.c.l.b16 %v72
    %v197 = vunpack.c.h.b16 %v72
    %v198 = vunpack.c.l.b16 %v73
    %v199 = vunpack.c.h.b16 %v73
    %v200 = vunpack.c.l.b16 %v74
    %v201 = vunpack.c.h.b16 %v74
    %v202 = vunpack.c.l.b16 %v75
    %v203 = vunpack.c.h.b16 %v75
    %v204 = vpack.c.b16 %v142, %v140
    %v205 = vpack.c.b16 %v143, %v141
    %v206 = vpack.c.b16 %v146, %v144
    %v207 = vpack.c.b16 %v147, %v145
    %v208 = vpack.c.b16 %v150, %v148
    %v209 = vpack.c.b16 %v151, %v149
    %v210 = vpack.c.b16 %v154, %v152
    %v211 = vpack.c.b16 %v155, %v153
    %v212 = vpack.c.b16 %v158, %v156
    %v213 = vpack.c.b16 %v159, %v157
    %v214 = vpack.c.b16 %v162, %v160
    %v215 = vpack.c.b16 %v163, %v161
    %v216 = vpack.c.b16 %v166, %v164
    %v217 = vpack.c.b16 %v167, %v165
    %v218 = vpack.c.b16 %v170, %v168
    %v219 = vpack.c.b16 %v171, %v169
    %v220 = vpack.c.b16 %v174, %v172
    %v221 = vpack.c.b16 %v175, %v173
    %v222 = vpack.c.b16 %v178, %v176
    %v223 = vpack.c.b16 %v179, %v177
    %v224 = vpack.c.b16 %v182, %v180
    %v225 = vpack.c.b16 %v183, %v181
    %v226 = vpack.c.b16 %v186, %v184
    %v227 = vpack.c.b16 %v187, %v185
    %v228 = vpack.c.b16 %v190, %v188
    %v229 = vpack.c.b16 %v191, %v189
    %v230 = vpack.c.b16 %v194, %v192
    %v231 = vpack.c.b16 %v195, %v193
    %v232 = vpack.c.b16 %v198, %v196
    %v233 = vpack.c.b16 %v199, %v197
    %v234 = vpack.c.b16 %v202, %v200
    %v235 = vpack.c.b16 %v203, %v201
    %v300 = vunpack.c.l.b16 %v76
    %v301 = vunpack.c.l.b16 %v77
    %v302 = vunpack.c.l.b16 %v78
    %v303 = vunpack.c.l.b16 %v79
    %v304 = vunpack.c.l.b16 %v80
    %v305 = vunpack.c.l.b16 %v81
    %v306 = vunpack.c.l.b16 %v82
    %v307 = vunpack.c.l.b16 %v83
    %v308 = vunpack.c.l.b16 %v84
    %v309 = vunpack.c.l.b16 %v85
    %v310 = vunpack.c.l.b16 %v86
    %v311 = vunpack.c.l.b16 %v87
    %v312 = vunpack.c.l.b16 %v88
    %v313 = vunpack.c.l.b16 %v89
    %v314 = vunpack.c.l.b16 %v90
    %v315 = vunpack.c.l.b16 %v91
    %v316 = vunpack.c.l.b16 %v92
    %v317 = vunpack.c.l.b16 %v93
    %v318 = vunpack.c.l.b16 %v94
    %v319 = vunpack.c.l.b16 %v95
    %v320 = vunpack.c.l.b16 %v96
    %v321 = vunpack.c.l.b16 %v97
    %v322 = vunpack.c.l.b16 %v98
    %v323 = vunpack.c.l.b16 %v99
    %v324 = vunpack.c.l.b16 %v100
    %v325 = vunpack.c.l.b16 %v101
    %v326 = vunpack.c.l.b16 %v102
    %v327 = vunpack.c.l.b16 %v103
    %v328 = vunpack.c.l.b16 %v104
    %v329 = vunpack.c.l.b16 %v105
    %v330 = vunpack.c.l.b16 %v106
    %v331 = vunpack.c.l.b16 %v107
    %v332 = vpack.c.b16 %v301, %v300
    %v333 = vpack.c.b16 %v303, %v302
    %v334 = vpack.c.b16 %v305, %v304
    %v335 = vpack.c.b16 %v307, %v306
    %v336 = vpack.c.b16 %v309, %v308
    %v337 = vpack.c.b16 %v311, %v310
    %v338 = vpack.c.b16 %v313, %v312
    %v339 = vpack.c.b16 %v315, %v314
    %v340 = vpack.c.b16 %v317, %v316
    %v341 = vpack.c.b16 %v319, %v318
    %v342 = vpack.c.b16 %v321, %v320
    %v343 = vpack.c.b16 %v323, %v322
    %v344 = vpack.c.b16 %v325, %v324
    %v345 = vpack.c.b16 %v327, %v326
    %v346 = vpack.c.b16 %v329, %v328
    %v347 = vpack.c.b16 %v331, %v330
    %364 = vmatpush.bf16.msra.mxu0 %v339
    %365 = vmatpush.bf16.msra.mxu0 %v338
    %366 = vmatpush.bf16.msra.mxu0 %v337
    %367 = vmatpush.bf16.msra.mxu0 %v336
    %368 = vmatpush.bf16.msra.mxu0 %v335
    %369 = vmatpush.bf16.msra.mxu0 %v334
    %370 = vmatpush.bf16.msra.mxu0 %v333
    %371 = vmatpush.bf16.msra.mxu0 %v332
    %372 = vmatmul.bf16.gmra.mxu0 %v204
    %v373 = vpop.f32.mrf.mxu0
    %v374 = vadd.f32 0.0, %v373
    %v375 = vpop.f32.mrf.mxu0
    %v376 = vadd.f32 0.0, %v375
    %377 = vmatmul.bf16.gmra.mxu0 %v206
    %v378 = vpop.f32.mrf.mxu0
    %v379 = vadd.f32 0.0, %v378
    %v380 = vpop.f32.mrf.mxu0
    %v381 = vadd.f32 0.0, %v380
    %382 = vmatmul.bf16.gmra.mxu0 %v208
    %v383 = vpop.f32.mrf.mxu0
    %v384 = vadd.f32 0.0, %v383
    %v385 = vpop.f32.mrf.mxu0
    %v386 = vadd.f32 0.0, %v385
    %387 = vmatmul.bf16.gmra.mxu0 %v210
    %v388 = vpop.f32.mrf.mxu0
    %v389 = vadd.f32 0.0, %v388
    %v390 = vpop.f32.mrf.mxu0
    %v391 = vadd.f32 0.0, %v390
    %392 = vmatmul.bf16.gmra.mxu0 %v212
    %v393 = vpop.f32.mrf.mxu0
    %v394 = vadd.f32 0.0, %v393
    %v395 = vpop.f32.mrf.mxu0
    %v396 = vadd.f32 0.0, %v395
    %397 = vmatmul.bf16.gmra.mxu0 %v214
    %v398 = vpop.f32.mrf.mxu0
    %v399 = vadd.f32 0.0, %v398
    %v400 = vpop.f32.mrf.mxu0
    %v401 = vadd.f32 0.0, %v400
    %402 = vmatmul.bf16.gmra.mxu0 %v216
    %v403 = vpop.f32.mrf.mxu0
    %v404 = vadd.f32 0.0, %v403
    %v405 = vpop.f32.mrf.mxu0
    %v406 = vadd.f32 0.0, %v405
    %407 = vmatmul.bf16.gmra.mxu0 %v218
    %v408 = vpop.f32.mrf.mxu0
    %v409 = vadd.f32 0.0, %v408
    %v410 = vpop.f32.mrf.mxu0
    %v411 = vadd.f32 0.0, %v410
    %412 = vmatmul.bf16.gmra.mxu0 %v220
    %v413 = vpop.f32.mrf.mxu0
    %v414 = vadd.f32 0.0, %v413
    %v415 = vpop.f32.mrf.mxu0
    %v416 = vadd.f32 0.0, %v415
    %417 = vmatmul.bf16.gmra.mxu0 %v222
    %v418 = vpop.f32.mrf.mxu0
    %v419 = vadd.f32 0.0, %v418
    %v420 = vpop.f32.mrf.mxu0
    %v421 = vadd.f32 0.0, %v420
    %422 = vmatmul.bf16.gmra.mxu0 %v224
    %v423 = vpop.f32.mrf.mxu0
    %v424 = vadd.f32 0.0, %v423
    %v425 = vpop.f32.mrf.mxu0
    %v426 = vadd.f32 0.0, %v425
    %427 = vmatmul.bf16.gmra.mxu0 %v226
    %v428 = vpop.f32.mrf.mxu0
    %v429 = vadd.f32 0.0, %v428
    %v430 = vpop.f32.mrf.mxu0
    %v431 = vadd.f32 0.0, %v430
    %432 = vmatmul.bf16.gmra.mxu0 %v228
    %v433 = vpop.f32.mrf.mxu0
    %v434 = vadd.f32 0.0, %v433
    %v435 = vpop.f32.mrf.mxu0
    %v436 = vadd.f32 0.0, %v435
    %437 = vmatmul.bf16.gmra.mxu0 %v230
    %v438 = vpop.f32.mrf.mxu0
    %v439 = vadd.f32 0.0, %v438
    %v440 = vpop.f32.mrf.mxu0
    %v441 = vadd.f32 0.0, %v440
    %442 = vmatmul.bf16.gmra.mxu0 %v232
    %v443 = vpop.f32.mrf.mxu0
    %v444 = vadd.f32 0.0, %v443
    %v445 = vpop.f32.mrf.mxu0
    %v446 = vadd.f32 0.0, %v445
    %447 = vmatmul.bf16.gmra.mxu0 %v234
    %v448 = vpop.f32.mrf.mxu0
    %v449 = vadd.f32 0.0, %v448
    %v450 = vpop.f32.mrf.mxu0
    %v451 = vadd.f32 0.0, %v450
    %452 = vdwg.mxu0
    %453 = vmatpush.bf16.msra.mxu0 %v347
    %454 = vmatpush.bf16.msra.mxu0 %v346
    %455 = vmatpush.bf16.msra.mxu0 %v345
    %456 = vmatpush.bf16.msra.mxu0 %v344
    %457 = vmatpush.bf16.msra.mxu0 %v343
    %458 = vmatpush.bf16.msra.mxu0 %v342
    %459 = vmatpush.bf16.msra.mxu0 %v341
    %460 = vmatpush.bf16.msra.mxu0 %v340
    %461 = vmatmul.bf16.gmra.mxu0 %v205
    %v462 = vpop.f32.mrf.mxu0
    %v463 = vadd.f32 %v374, %v462
    %v464 = vpop.f32.mrf.mxu0
    %v465 = vadd.f32 %v376, %v464
    %466 = vmatmul.bf16.gmra.mxu0 %v207
    %v467 = vpop.f32.mrf.mxu0
    %v468 = vadd.f32 %v379, %v467
    %v469 = vpop.f32.mrf.mxu0
    %v470 = vadd.f32 %v381, %v469
    %471 = vmatmul.bf16.gmra.mxu0 %v209
    %v472 = vpop.f32.mrf.mxu0
    %v473 = vadd.f32 %v384, %v472
    %v474 = vpop.f32.mrf.mxu0
    %v475 = vadd.f32 %v386, %v474
    %476 = vmatmul.bf16.gmra.mxu0 %v211
    %v477 = vpop.f32.mrf.mxu0
    %v478 = vadd.f32 %v389, %v477
    %v479 = vpop.f32.mrf.mxu0
    %v480 = vadd.f32 %v391, %v479
    %481 = vmatmul.bf16.gmra.mxu0 %v213
    %v482 = vpop.f32.mrf.mxu0
    %v483 = vadd.f32 %v394, %v482
    %v484 = vpop.f32.mrf.mxu0
    %v485 = vadd.f32 %v396, %v484
    %486 = vmatmul.bf16.gmra.mxu0 %v215
    %v487 = vpop.f32.mrf.mxu0
    %v488 = vadd.f32 %v399, %v487
    %v489 = vpop.f32.mrf.mxu0
    %v490 = vadd.f32 %v401, %v489
    %491 = vmatmul.bf16.gmra.mxu0 %v217
    %v492 = vpop.f32.mrf.mxu0
    %v493 = vadd.f32 %v404, %v492
    %v494 = vpop.f32.mrf.mxu0
    %v495 = vadd.f32 %v406, %v494
    %496 = vmatmul.bf16.gmra.mxu0 %v219
    %v497 = vpop.f32.mrf.mxu0
    %v498 = vadd.f32 %v409, %v497
    %v499 = vpop.f32.mrf.mxu0
    %v500 = vadd.f32 %v411, %v499
    %501 = vmatmul.bf16.gmra.mxu0 %v221
    %v502 = vpop.f32.mrf.mxu0
    %v503 = vadd.f32 %v414, %v502
    %v504 = vpop.f32.mrf.mxu0
    %v505 = vadd.f32 %v416, %v504
    %506 = vmatmul.bf16.gmra.mxu0 %v223
    %v507 = vpop.f32.mrf.mxu0
    %v508 = vadd.f32 %v419, %v507
    %v509 = vpop.f32.mrf.mxu0
    %v510 = vadd.f32 %v421, %v509
    %511 = vmatmul.bf16.gmra.mxu0 %v225
    %v512 = vpop.f32.mrf.mxu0
    %v513 = vadd.f32 %v424, %v512
    %v514 = vpop.f32.mrf.mxu0
    %v515 = vadd.f32 %v426, %v514
    %516 = vmatmul.bf16.gmra.mxu0 %v227
    %v517 = vpop.f32.mrf.mxu0
    %v518 = vadd.f32 %v429, %v517
    %v519 = vpop.f32.mrf.mxu0
    %v520 = vadd.f32 %v431, %v519
    %521 = vmatmul.bf16.gmra.mxu0 %v229
    %v522 = vpop.f32.mrf.mxu0
    %v523 = vadd.f32 %v434, %v522
    %v524 = vpop.f32.mrf.mxu0
    %v525 = vadd.f32 %v436, %v524
    %526 = vmatmul.bf16.gmra.mxu0 %v231
    %v527 = vpop.f32.mrf.mxu0
    %v528 = vadd.f32 %v439, %v527
    %v529 = vpop.f32.mrf.mxu0
    %v530 = vadd.f32 %v441, %v529
    %531 = vmatmul.bf16.gmra.mxu0 %v233
    %v532 = vpop.f32.mrf.mxu0
    %v533 = vadd.f32 %v444, %v532
    %v534 = vpop.f32.mrf.mxu0
    %v535 = vadd.f32 %v446, %v534
    %536 = vmatmul.bf16.gmra.mxu0 %v235
    %v537 = vpop.f32.mrf.mxu0
    %v538 = vadd.f32 %v449, %v537
    %v539 = vpop.f32.mrf.mxu0
    %v540 = vadd.f32 %v451, %v539
    %541 = vdwg.mxu0
    %v542 = vpack.c.bf16 %v463, %v463
    %v543 = vpack.c.bf16 %v465, %v465
    %v544 = vpack.c.bf16 %v468, %v468
    %v545 = vpack.c.bf16 %v470, %v470
    %v546 = vpack.c.bf16 %v473, %v473
    %v547 = vpack.c.bf16 %v475, %v475
    %v548 = vpack.c.bf16 %v478, %v478
    %v549 = vpack.c.bf16 %v480, %v480
    %v550 = vpack.c.bf16 %v483, %v483
    %v551 = vpack.c.bf16 %v485, %v485
    %v552 = vpack.c.bf16 %v488, %v488
    %v553 = vpack.c.bf16 %v490, %v490
    %v554 = vpack.c.bf16 %v493, %v493
    %v555 = vpack.c.bf16 %v495, %v495
    %v556 = vpack.c.bf16 %v498, %v498
    %v557 = vpack.c.bf16 %v500, %v500
    %v558 = vpack.c.bf16 %v503, %v503
    %v559 = vpack.c.bf16 %v505, %v505
    %v560 = vpack.c.bf16 %v508, %v508
    %v561 = vpack.c.bf16 %v510, %v510
    %v562 = vpack.c.bf16 %v513, %v513
    %v563 = vpack.c.bf16 %v515, %v515
    %v564 = vpack.c.bf16 %v518, %v518
    %v565 = vpack.c.bf16 %v520, %v520
    %v566 = vpack.c.bf16 %v523, %v523
    %v567 = vpack.c.bf16 %v525, %v525
    %v568 = vpack.c.bf16 %v528, %v528
    %v569 = vpack.c.bf16 %v530, %v530
    %v570 = vpack.c.bf16 %v533, %v533
    %v571 = vpack.c.bf16 %v535, %v535
    %v572 = vpack.c.bf16 %v538, %v538
    %v573 = vpack.c.bf16 %v540, %v540
    %574 = vst [vmem:[#allocation7] sm:$0xf] %v542
    %575 = vst [vmem:[#allocation7 + $0x4] sm:$0xf] %v543
    %576 = vst [vmem:[#allocation7 + $0x8] sm:$0xf] %v544
    %577 = vst [vmem:[#allocation7 + $0xc] sm:$0xf] %v545
    %578 = vst [vmem:[#allocation7 + $0x10] sm:$0xf] %v546
    %579 = vst [vmem:[#allocation7 + $0x14] sm:$0xf] %v547
    %580 = vst [vmem:[#allocation7 + $0x18] sm:$0xf] %v548
    %581 = vst [vmem:[#allocation7 + $0x1c] sm:$0xf] %v549
    %582 = vst [vmem:[#allocation7 + $0x20] sm:$0xf] %v550
    %583 = vst [vmem:[#allocation7 + $0x24] sm:$0xf] %v551
    %584 = vst [vmem:[#allocation7 + $0x28] sm:$0xf] %v552
    %585 = vst [vmem:[#allocation7 + $0x2c] sm:$0xf] %v553
    %586 = vst [vmem:[#allocation7 + $0x30] sm:$0xf] %v554
    %587 = vst [vmem:[#allocation7 + $0x34] sm:$0xf] %v555
    %588 = vst [vmem:[#allocation7 + $0x38] sm:$0xf] %v556
    %589 = vst [vmem:[#allocation7 + $0x3c] sm:$0xf] %v557
    %590 = vst [vmem:[#allocation7 + $0x40] sm:$0xf] %v558
    %591 = vst [vmem:[#allocation7 + $0x44] sm:$0xf] %v559
    %592 = vst [vmem:[#allocation7 + $0x48] sm:$0xf] %v560
    %593 = vst [vmem:[#allocation7 + $0x4c] sm:$0xf] %v561
    %594 = vst [vmem:[#allocation7 + $0x50] sm:$0xf] %v562
    %595 = vst [vmem:[#allocation7 + $0x54] sm:$0xf] %v563
    %596 = vst [vmem:[#allocation7 + $0x58] sm:$0xf] %v564
    %597 = vst [vmem:[#allocation7 + $0x5c] sm:$0xf] %v565
    %598 = vst [vmem:[#allocation7 + $0x60] sm:$0xf] %v566
    %599 = vst [vmem:[#allocation7 + $0x64] sm:$0xf] %v567
    %600 = vst [vmem:[#allocation7 + $0x68] sm:$0xf] %v568
    %601 = vst [vmem:[#allocation7 + $0x6c] sm:$0xf] %v569
    %602 = vst [vmem:[#allocation7 + $0x70] sm:$0xf] %v570
    %603 = vst [vmem:[#allocation7 + $0x74] sm:$0xf] %v571
    %604 = vst [vmem:[#allocation7 + $0x78] sm:$0xf] %v572
    %605 = vst [vmem:[#allocation7 + $0x7c] sm:$0xf] %v573
    // Predicated region
    $region18: #{tpu_custom_call.1} parent=1 // pred_check
      _
    $region19: #{tpu_custom_call.1} parent=1 // pred_check_branch
      %607 = sbr.rel (0) target = $region21
    $region20: #{tpu_custom_call.1} parent=1 // pred_region
      %609 = vsyncadd [#allocation4], 0
      %s610 = sshll.u32 [#allocation7], 4
      %s611 = int_to_ptr.vmem [resolvable:$true] %s610
      %s612 = sshll.u32 %s2, 4
      %s613 = int_to_ptr.hbm [resolvable:$true] %s612
      %618 = dma.vmem_to_hbm [thread:$0]  %s611, 2048, %s613, [#allocation4], 64, 64, 4
    $region21: #{tpu_custom_call.1} parent=1 // pred_fallthru
      _
    // Predicated region
    $region22: #{tpu_custom_call.1} parent=1 // pred_check
      _
    $region23: #{tpu_custom_call.1} parent=1 // pred_check_branch
      %620 = sbr.rel (0) target = $region25
    $region24: #{tpu_custom_call.1} parent=1 // pred_region
      %622 = dma.done [#allocation4], 2048
    $region25: #{tpu_custom_call.1} parent=1 // pred_fallthru
      _
    %623 = vsyncpa [#allocation3], 1
    %624 = vsyncpa [#allocation6], 1
    %625 = vsyncpa [#allocation4], 1

</llo_original>
